<compile_context>
chip_gen: v5e
topology: v5e:2x2
jax: 0.10.0
libtpu: 0.0.40
codegen_flags: <defaults>
</compile_context>

<pallas_src>
import jax
import jax.numpy as jnp
from jax.experimental import pallas as pl
from jax.experimental.pallas import tpu as pltpu

LANE = 128


def _round_up(x, m):
    return ((x + m - 1) // m) * m


def _vmem_capacity_bytes():
    try:
        return int(pltpu.get_tpu_info().vmem_capacity_bytes)
    except Exception:
        return 64 << 20  # conservative (v7x-sized) fallback


def mlp_d4_kernel(x_ref, att_ref, w1x_ref, w1a_ref, b1_ref, w2_ref, b2_ref,
                  out_ref, acc_ref):
    k = pl.program_id(1)

    @pl.when(k == 0)
    def _():
        acc_ref[...] = jnp.zeros_like(acc_ref)

    # fc1 on the concatenated input, without materializing the concat:
    #   [x, att] @ W1[:, nblk] == x @ W1x[:, nblk] + att @ W1a[:, nblk]
    cdt = w1x_ref.dtype
    h = jnp.dot(x_ref[...].astype(cdt), w1x_ref[...],
                preferred_element_type=jnp.float32)
    h = h + jnp.dot(att_ref[...].astype(cdt), w1a_ref[...],
                    preferred_element_type=jnp.float32)
    h = h + b1_ref[...]                      # (TB, TN) + (1, TN), f32
    h = jnp.maximum(h, 0.2 * h)              # LeakyReLU(0.2), one vmax

    # fc2 partial sum over this ndh block (output lanes padded to 128).
    acc_ref[...] += jnp.dot(h.astype(w2_ref.dtype), w2_ref[...],
                            preferred_element_type=jnp.float32)

    @pl.when(k == pl.num_programs(1) - 1)
    def _():
        out_ref[...] = (acc_ref[...] + b2_ref[...]).astype(out_ref.dtype)


def prepare_params(params, *, compute_dtype=jnp.bfloat16, ndh_tile=None):
    """One-time cast/pad of the weights (do NOT call per forward).

    Pads the fc2 lane dim to 128 and ndh to a multiple of the ndh tile
    (zero hidden units contribute exactly 0), and casts matmul weights to
    compute_dtype (bf16 by default; float32 escape hatch available)."""
    w1x, w1a, b1, w2, b2 = (params["w1x"], params["w1a"], params["b1"],
                            params["w2"], params["b2"])
    res, ndh = w1x.shape
    nout = w2.shape[1]
    nout_p = _round_up(nout, LANE)

    if ndh_tile is None:
        ndh_tile = ndh if ndh <= 512 else 512   # stream 512-wide blocks
    tn = ndh_tile
    ndh_p = _round_up(ndh, tn)
    pad_n = ndh_p - ndh

    return {
        "w1x": jnp.pad(w1x, ((0, 0), (0, pad_n))).astype(compute_dtype),
        "w1a": jnp.pad(w1a, ((0, 0), (0, pad_n))).astype(compute_dtype),
        "b1": jnp.pad(b1, ((0, 0), (0, pad_n))).astype(jnp.float32),
        "w2": jnp.pad(w2, ((0, pad_n), (0, nout_p - nout))).astype(compute_dtype),
        "b2": jnp.pad(b2, ((0, 0), (0, nout_p - nout))).astype(jnp.float32),
        "ndh_tile": tn,
        "nout": nout,
    }


def mlp_d4_forward(x, att, prepared, *, batch_tile=None):
    """x: (B, resSize) f32, att: (B, attSize) f32, prepared: prepare_params().
    Returns pred1: (B, 1) float32."""
    w1x, w1a, b1, w2, b2 = (prepared["w1x"], prepared["w1a"], prepared["b1"],
                            prepared["w2"], prepared["b2"])
    TN = int(prepared["ndh_tile"])
    nout = int(prepared["nout"])

    B = x.shape[0]
    res, ndh_p = w1x.shape
    att_size = w1a.shape[0]
    nout_p = w2.shape[1]
    cbytes = jnp.dtype(w1x.dtype).itemsize

    cap = _vmem_capacity_bytes()
    big_vmem = cap >= (100 << 20)            # v5e / v6e (128 MiB)

    # Batch tile: keep >=2 parallel grid steps for v7x's 2 TCs at mid batch,
    # bigger tiles only where 128 MiB VMEM gives headroom; multiples of 16.
    if batch_tile is None:
        if B >= 1024 and big_vmem:
            batch_tile = 512
        elif B >= 512:
            batch_tile = 256
        elif B >= 256:
            batch_tile = 128
        else:
            batch_tile = max(16, _round_up(B, 16))
    TB = batch_tile
    Bp = pl.cdiv(B, TB) * TB

    if Bp != B:
        x = jnp.pad(x, ((0, Bp - B), (0, 0)))
        att = jnp.pad(att, ((0, Bp - B), (0, 0)))

    # VMEM budget: double-buffered streamed blocks + accumulator scratch +
    # fc1 intermediate (f32), clamped to 7/8 of the chip's real capacity.
    block_bytes = (TB * res * 4 + TB * att_size * 4          # x / att tiles (f32)
                   + res * TN * cbytes + att_size * TN * cbytes
                   + TN * 4 + TN * nout_p * cbytes + nout_p * 4
                   + TB * nout_p * 4)                        # output tile
    scratch_bytes = TB * nout_p * 4                          # accumulator
    interm_bytes = 3 * TB * TN * 4                           # h + temporaries
    vmem_needed = 2 * block_bytes + scratch_bytes + interm_bytes + (4 << 20)
    vmem_limit = int(min(max(vmem_needed, 16 << 20), (cap * 7) // 8))

    grid = (Bp // TB, ndh_p // TN)

    flops = 2 * Bp * (res + att_size) * ndh_p + 2 * Bp * ndh_p * nout_p
    bytes_accessed = ((res + att_size) * ndh_p * cbytes      # W1
                      + ndh_p * nout_p * cbytes              # W2
                      + (ndh_p + nout_p) * 4                 # biases
                      + Bp * (res + att_size) * 4            # activations
                      + Bp * nout_p * 4)                     # output
    cost = pl.CostEstimate(flops=flops, transcendentals=0,
                           bytes_accessed=bytes_accessed)

    out = pl.pallas_call(
        mlp_d4_kernel,
        grid=grid,
        in_specs=[
            pl.BlockSpec((TB, res), lambda i, k: (i, 0)),        # x tile (held over k)
            pl.BlockSpec((TB, att_size), lambda i, k: (i, 0)),   # att tile
            pl.BlockSpec((res, TN), lambda i, k: (0, k)),        # W1[:res, nblk]
            pl.BlockSpec((att_size, TN), lambda i, k: (0, k)),   # W1[res:, nblk]
            pl.BlockSpec((1, TN), lambda i, k: (0, k)),          # b1 block
            pl.BlockSpec((TN, nout_p), lambda i, k: (k, 0)),     # W2[nblk, :]
            pl.BlockSpec((1, nout_p), lambda i, k: (0, 0)),      # b2
        ],
        out_specs=pl.BlockSpec((TB, nout_p), lambda i, k: (i, 0)),
        out_shape=jax.ShapeDtypeStruct((Bp, nout_p), jnp.float32),
        scratch_shapes=[pltpu.VMEM((TB, nout_p), jnp.float32)],
        compiler_params=pltpu.CompilerParams(
            dimension_semantics=("parallel", "arbitrary"),
            vmem_limit_bytes=vmem_limit,
        ),
        cost_estimate=cost,
    )(x, att, w1x, w1a, b1, w2, b2)

    return out[:B, :nout]


def init_params(key, res_size, att_size, ndh):
    """Mimic weights_init: Linear weights ~ N(0, 0.02), biases = 0.
    Weights stored as (in, out); fc1 weight pre-split into x/att row blocks."""
    k1, k2 = jax.random.split(key, 2)
    din = res_size + att_size
    w1 = 0.02 * jax.random.normal(k1, (din, ndh), jnp.float32)
    return {
        "w1x": w1[:res_size],
        "w1a": w1[res_size:],
        "b1": jnp.zeros((1, ndh), jnp.float32),
        "w2": 0.02 * jax.random.normal(k2, (ndh, 1), jnp.float32),
        "b2": jnp.zeros((1, 1), jnp.float32),
    }


def reference_forward(x, att, params):
    xc = jnp.concatenate([x, att], axis=1)
    w1 = jnp.concatenate([params["w1x"], params["w1a"]], axis=0)
    h = xc @ w1 + params["b1"]
    h = jnp.where(h > 0, h, 0.2 * h)
    return h @ params["w2"] + params["b2"]


if __name__ == "__main__":
    # Small shapes consistent with the module's opt fields.
    B, RES, ATT, NDH = 8, 16, 16, 32

    key = jax.random.PRNGKey(0)
    kx, katt, kp = jax.random.split(key, 3)
    x = jax.random.normal(kx, (B, RES), jnp.float32)
    att = jax.random.normal(katt, (B, ATT), jnp.float32)
    params = init_params(kp, RES, ATT, NDH)

    # One-time weight cast/pad (kept out of the per-forward path).
    prepared = prepare_params(params)

    pred1 = mlp_d4_forward(x, att, prepared)
    jax.block_until_ready(pred1)

    # Sanity check against a pure-JAX f32 reference (bf16 matmul tolerance).
    ref = reference_forward(x, att, params)
    assert pred1.shape == (B, 1)
    assert jnp.allclose(pred1, ref, atol=5e-3, rtol=5e-2), (
        f"max abs diff {jnp.max(jnp.abs(pred1 - ref))}")

    print("KERNEL_OK")
</pallas_src>

<mosaic_0001>
module attributes {stable_mosaic.version = 11 : i64} {
  func.func @mlp_d4_kernel(%arg0: i32, %arg1: i32, %arg2: memref<16x16xf32, #tpu.memory_space<vmem>>, %arg3: memref<16x16xf32, #tpu.memory_space<vmem>>, %arg4: memref<16x32xbf16, #tpu.memory_space<vmem>>, %arg5: memref<16x32xbf16, #tpu.memory_space<vmem>>, %arg6: memref<1x32xf32, #tpu.memory_space<vmem>>, %arg7: memref<32x128xbf16, #tpu.memory_space<vmem>>, %arg8: memref<1x128xf32, #tpu.memory_space<vmem>>, %arg9: memref<16x128xf32, #tpu.memory_space<vmem>>, %arg10: memref<16x128xf32, #tpu.memory_space<vmem>>) attributes {dimension_semantics = [#tpu.dimension_semantics<parallel>, #tpu.dimension_semantics<arbitrary>], iteration_bounds = array<i64: 1, 1>, scalar_prefetch = 0 : i64, scratch_operands = 1 : i64, tpu.core_type = #tpu.core_type<tc>, window_params = [{transform_indices = @transform_0, window_bounds = array<i64: 16, 16>}, {transform_indices = @transform_1, window_bounds = array<i64: 16, 16>}, {transform_indices = @transform_2, window_bounds = array<i64: 16, 32>}, {transform_indices = @transform_3, window_bounds = array<i64: 16, 32>}, {transform_indices = @transform_4, window_bounds = array<i64: 1, 32>}, {transform_indices = @transform_5, window_bounds = array<i64: 32, 128>}, {pipeline_mode = #tpu.pipeline_mode<synchronous>, transform_indices = @transform_6, window_bounds = array<i64: 1, 128>}, {transform_indices = @transform_7, window_bounds = array<i64: 16, 128>}]} {
    %c0_i32 = arith.constant 0 : i32
    %0 = arith.cmpi eq, %arg1, %c0_i32 : i32
    %1 = arith.extui %0 : i1 to i32
    %c0_i32_0 = arith.constant 0 : i32
    %2 = arith.cmpi ne, %1, %c0_i32_0 : i32
    scf.if %2 {
      %cst_21 = arith.constant 0.000000e+00 : f32
      %27 = vector.broadcast %cst_21 : f32 to vector<16x128xf32>
      %c0_22 = arith.constant 0 : index
      %c0_23 = arith.constant 0 : index
      %28 = vector.load %arg10[%c0_22, %c0_23] : memref<16x128xf32, #tpu.memory_space<vmem>>, vector<16x128xf32>
      tpu.vector_store %arg10[%c0_22, %c0_23], %27 {strides = array<i32>} : memref<16x128xf32, #tpu.memory_space<vmem>>, vector<16x128xf32>,
    } else {
    }
    %c0 = arith.constant 0 : index
    %c0_1 = arith.constant 0 : index
    %3 = vector.load %arg2[%c0, %c0_1] : memref<16x16xf32, #tpu.memory_space<vmem>>, vector<16x16xf32>
    %4 = arith.truncf %3 : vector<16x16xf32> to vector<16x16xbf16>
    %c0_2 = arith.constant 0 : index
    %c0_3 = arith.constant 0 : index
    %5 = vector.load %arg4[%c0_2, %c0_3] : memref<16x32xbf16, #tpu.memory_space<vmem>>, vector<16x32xbf16>
    %cst = arith.constant dense<0.000000e+00> : vector<16x32xf32>
    %6 = tpu.matmul %4, %5, %cst {dimension_numbers = #tpu.dot_dimension_numbers<[1], [0], [0], [1], [0, 0, 1, 1], [], []>} : vector<16x16xbf16>, vector<16x32xbf16>, vector<16x32xf32> -> vector<16x32xf32>
    %c0_4 = arith.constant 0 : index
    %c0_5 = arith.constant 0 : index
    %7 = vector.load %arg3[%c0_4, %c0_5] : memref<16x16xf32, #tpu.memory_space<vmem>>, vector<16x16xf32>
    %8 = arith.truncf %7 : vector<16x16xf32> to vector<16x16xbf16>
    %c0_6 = arith.constant 0 : index
    %c0_7 = arith.constant 0 : index
    %9 = vector.load %arg5[%c0_6, %c0_7] : memref<16x32xbf16, #tpu.memory_space<vmem>>, vector<16x32xbf16>
    %cst_8 = arith.constant dense<0.000000e+00> : vector<16x32xf32>
    %10 = tpu.matmul %8, %9, %cst_8 {dimension_numbers = #tpu.dot_dimension_numbers<[1], [0], [0], [1], [0, 0, 1, 1], [], []>} : vector<16x16xbf16>, vector<16x32xbf16>, vector<16x32xf32> -> vector<16x32xf32>
    %11 = arith.addf %6, %10 : vector<16x32xf32>
    %c0_9 = arith.constant 0 : index
    %c0_10 = arith.constant 0 : index
    %12 = vector.load %arg6[%c0_9, %c0_10] : memref<1x32xf32, #tpu.memory_space<vmem>>, vector<1x32xf32>
    %13 = vector.broadcast %12 : vector<1x32xf32> to vector<16x32xf32>
    %14 = arith.addf %11, %13 : vector<16x32xf32>
    %cst_11 = arith.constant 2.000000e-01 : f32
    %15 = vector.broadcast %cst_11 : f32 to vector<16x32xf32>
    %16 = arith.mulf %15, %14 : vector<16x32xf32>
    %17 = arith.maximumf %14, %16 : vector<16x32xf32>
    %c0_12 = arith.constant 0 : index
    %c0_13 = arith.constant 0 : index
    %18 = vector.load %arg10[%c0_12, %c0_13] : memref<16x128xf32, #tpu.memory_space<vmem>>, vector<16x128xf32>
    %19 = arith.truncf %17 : vector<16x32xf32> to vector<16x32xbf16>
    %c0_14 = arith.constant 0 : index
    %c0_15 = arith.constant 0 : index
    %20 = vector.load %arg7[%c0_14, %c0_15] : memref<32x128xbf16, #tpu.memory_space<vmem>>, vector<32x128xbf16>
    %cst_16 = arith.constant dense<0.000000e+00> : vector<16x128xf32>
    %21 = tpu.matmul %19, %20, %cst_16 {dimension_numbers = #tpu.dot_dimension_numbers<[1], [0], [0], [1], [0, 0, 1, 1], [], []>} : vector<16x32xbf16>, vector<32x128xbf16>, vector<16x128xf32> -> vector<16x128xf32>
    %22 = arith.addf %18, %21 : vector<16x128xf32>
    %c0_17 = arith.constant 0 : index
    %c0_18 = arith.constant 0 : index
    %23 = vector.load %arg10[%c0_17, %c0_18] : memref<16x128xf32, #tpu.memory_space<vmem>>, vector<16x128xf32>
    tpu.vector_store %arg10[%c0_17, %c0_18], %22 {strides = array<i32>} : memref<16x128xf32, #tpu.memory_space<vmem>>, vector<16x128xf32>,
    %c0_i32_19 = arith.constant 0 : i32
    %24 = arith.cmpi eq, %arg1, %c0_i32_19 : i32
    %25 = arith.extui %24 : i1 to i32
    %c0_i32_20 = arith.constant 0 : i32
    %26 = arith.cmpi ne, %25, %c0_i32_20 : i32
    scf.if %26 {
      %c0_21 = arith.constant 0 : index
      %c0_22 = arith.constant 0 : index
      %27 = vector.load %arg10[%c0_21, %c0_22] : memref<16x128xf32, #tpu.memory_space<vmem>>, vector<16x128xf32>
      %c0_23 = arith.constant 0 : index
      %c0_24 = arith.constant 0 : index
      %28 = vector.load %arg8[%c0_23, %c0_24] : memref<1x128xf32, #tpu.memory_space<vmem>>, vector<1x128xf32>
      %29 = vector.broadcast %28 : vector<1x128xf32> to vector<16x128xf32>
      %30 = arith.addf %27, %29 : vector<16x128xf32>
      %c0_25 = arith.constant 0 : index
      %c0_26 = arith.constant 0 : index
      %31 = vector.load %arg9[%c0_25, %c0_26] : memref<16x128xf32, #tpu.memory_space<vmem>>, vector<16x128xf32>
      tpu.vector_store %arg9[%c0_25, %c0_26], %30 {strides = array<i32>} : memref<16x128xf32, #tpu.memory_space<vmem>>, vector<16x128xf32>,
    } else {
    }
    return
  }
  func.func @transform_0(%arg0: i32, %arg1: i32) -> (i32, i32) {
    %c0_i32 = arith.constant 0 : i32
    %c0_i32_0 = arith.constant 0 : i32
    return %arg0, %c0_i32 : i32, i32
  }
  func.func @transform_1(%arg0: i32, %arg1: i32) -> (i32, i32) {
    %c0_i32 = arith.constant 0 : i32
    %c0_i32_0 = arith.constant 0 : i32
    return %arg0, %c0_i32 : i32, i32
  }
  func.func @transform_2(%arg0: i32, %arg1: i32) -> (i32, i32) {
    %c0_i32 = arith.constant 0 : i32
    %c0_i32_0 = arith.constant 0 : i32
    return %c0_i32, %arg1 : i32, i32
  }
  func.func @transform_3(%arg0: i32, %arg1: i32) -> (i32, i32) {
    %c0_i32 = arith.constant 0 : i32
    %c0_i32_0 = arith.constant 0 : i32
    return %c0_i32, %arg1 : i32, i32
  }
  func.func @transform_4(%arg0: i32, %arg1: i32) -> (i32, i32) {
    %c0_i32 = arith.constant 0 : i32
    %c0_i32_0 = arith.constant 0 : i32
    return %c0_i32, %arg1 : i32, i32
  }
  func.func @transform_5(%arg0: i32, %arg1: i32) -> (i32, i32) {
    %c0_i32 = arith.constant 0 : i32
    %c0_i32_0 = arith.constant 0 : i32
    return %arg1, %c0_i32 : i32, i32
  }
  func.func @transform_6(%arg0: i32, %arg1: i32) -> (i32, i32) {
    %c0_i32 = arith.constant 0 : i32
    %c0_i32_0 = arith.constant 0 : i32
    %c0_i32_1 = arith.constant 0 : i32
    return %c0_i32, %c0_i32_0 : i32, i32
  }
  func.func @transform_7(%arg0: i32, %arg1: i32) -> (i32, i32) {
    %c0_i32 = arith.constant 0 : i32
    %c0_i32_0 = arith.constant 0 : i32
    return %arg0, %c0_i32 : i32, i32
  }
}

</mosaic_0001>

<llo_original>
// kernel: tpu_custom_call.1
$region0: #{tpu_custom_call.1}
  #allocation0 [shape = 'u32[]', space=smem, size = 0x4, offset = 0x4, fixed_abs, tag = 'smem constant byte address 0x4 - core index']
  #allocation1 [shape = 'u32[72,128]{1,0:T(1,128)}', space=vmem, size = 0x9000, scoped, tag = 'internal scratch']
  #allocation2 [shape = 'f32[16,128]{1,0:T(8,128)}', space=vmem, size = 0x2000, scoped, tag = 'scratch operand']
  %s0 = inlined_call_operand.hbm [shape: f32[16,16], index: 0, kind: input, shape index: {}]
  %s1 = inlined_call_operand.hbm [shape: f32[16,16], index: 1, kind: input, shape index: {}]
  %s2 = inlined_call_operand.hbm [shape: bf16[16,32], index: 2, kind: input, shape index: {}]
  %s3 = inlined_call_operand.hbm [shape: bf16[16,32], index: 3, kind: input, shape index: {}]
  %s4 = inlined_call_operand.vmem [shape: f32[1,32], index: 4, kind: input, shape index: {}]
  %s5 = inlined_call_operand.hbm [shape: bf16[32,128], index: 5, kind: input, shape index: {}]
  %s6 = inlined_call_operand.vmem [shape: f32[1,128], index: 6, kind: input, shape index: {}]
  %s7 = inlined_call_operand.hbm [shape: f32[16,128], index: 7, kind: output, shape index: {}]
  %s8 = sld [smem:[#allocation0]]
  $region66: #{tpu_custom_call.1} parent=0
    _
  %s10 = ssub.s32 1, %s8
  %s11 = scalar_select 0, %s10, %s8
  $region1: #{tpu_custom_call.1} parent=0
    #allocation3 [shape = 'u8[8192]{0}', space=vmem, size = 0x2000, scoped, tag = 'input window, operand 0, single buffered']
    #allocation4 [shape = 's32[1]{0}', space=sflag, size = 0x4, scoped, tag = 'scoped memory for tpu_custom_call.1']
    #allocation5 [shape = 's32[1]{0}', space=sflag, size = 0x4, scoped, tag = 'scoped memory for tpu_custom_call.1']
    #allocation6 [shape = 'u8[8192]{0}', space=vmem, size = 0x2000, scoped, tag = 'input window, operand 1, single buffered']
    #allocation7 [shape = 's32[1]{0}', space=sflag, size = 0x4, scoped, tag = 'scoped memory for tpu_custom_call.1']
    #allocation8 [shape = 'u8[4096]{0}', space=vmem, size = 0x1000, scoped, tag = 'input window, operand 2, single buffered']
    #allocation9 [shape = 'u8[4096]{0}', space=vmem, size = 0x1000, scoped, tag = 'input window, operand 3, single buffered']
    #allocation10 [shape = 's32[1]{0}', space=sflag, size = 0x4, scoped, tag = 'scoped memory for tpu_custom_call.1']
    #allocation11 [shape = 'u8[8192]{0}', space=vmem, size = 0x2000, scoped, tag = 'input window, operand 5, single buffered']
    #allocation12 [shape = 'u8[8192]{0}', space=vmem, size = 0x2000, scoped, tag = 'output window, operand 0, single buffered']
    %12 = vsyncpa [#allocation4], 0
    %13 = vsyncpa [#allocation7], 0
    %14 = vsyncpa [#allocation10], 0
    %15 = vsyncpa [#allocation5], 0
    // Predicated region
    $region2: #{tpu_custom_call.1} parent=1 // pred_check
      _
    $region3: #{tpu_custom_call.1} parent=1 // pred_check_branch
      %17 = sbr.rel (0) target = $region5
    $region4: #{tpu_custom_call.1} parent=1 // pred_region
      %19 = vsyncadd [#allocation4], 0
      %s20 = sshll.u32 %s0, 4
      %s21 = int_to_ptr.hbm [resolvable:$true] %s20
      %s22 = sshll.u32 [#allocation3], 4
      %s23 = int_to_ptr.vmem [resolvable:$true] %s22
      %28 = dma.hbm_to_vmem [thread:$0]  %s21, 256, %s23, [#allocation4], 128, 128, 8
    $region5: #{tpu_custom_call.1} parent=1 // pred_fallthru
      _
    // Predicated region
    $region6: #{tpu_custom_call.1} parent=1 // pred_check
      _
    $region7: #{tpu_custom_call.1} parent=1 // pred_check_branch
      %30 = sbr.rel (0) target = $region9
    $region8: #{tpu_custom_call.1} parent=1 // pred_region
      %32 = vsyncadd [#allocation7], 0
      %s33 = sshll.u32 %s1, 4
      %s34 = int_to_ptr.hbm [resolvable:$true] %s33
      %s35 = sshll.u32 [#allocation6], 4
      %s36 = int_to_ptr.vmem [resolvable:$true] %s35
      %41 = dma.hbm_to_vmem [thread:$0]  %s34, 256, %s36, [#allocation7], 128, 128, 8
    $region9: #{tpu_custom_call.1} parent=1 // pred_fallthru
      _
    // Predicated region
    $region10: #{tpu_custom_call.1} parent=1 // pred_check
      _
    $region11: #{tpu_custom_call.1} parent=1 // pred_check_branch
      %43 = sbr.rel (0) target = $region13
    $region12: #{tpu_custom_call.1} parent=1 // pred_region
      %45 = vsyncadd [#allocation7], 0
      %s46 = sshll.u32 %s2, 4
      %s47 = int_to_ptr.hbm [resolvable:$true] %s46
      %s48 = sshll.u32 [#allocation8], 4
      %s49 = int_to_ptr.vmem [resolvable:$true] %s48
      %54 = dma.hbm_to_vmem [thread:$0]  %s47, 128, %s49, [#allocation7], 64, 64, 4
    $region13: #{tpu_custom_call.1} parent=1 // pred_fallthru
      _
    // Predicated region
    $region14: #{tpu_custom_call.1} parent=1 // pred_check
      _
    $region15: #{tpu_custom_call.1} parent=1 // pred_check_branch
      %56 = sbr.rel (0) target = $region17
    $region16: #{tpu_custom_call.1} parent=1 // pred_region
      %58 = vsyncadd [#allocation10], 0
      %s59 = sshll.u32 %s3, 4
      %s60 = int_to_ptr.hbm [resolvable:$true] %s59
      %s61 = sshll.u32 [#allocation9], 4
      %s62 = int_to_ptr.vmem [resolvable:$true] %s61
      %67 = dma.hbm_to_vmem [thread:$0]  %s60, 128, %s62, [#allocation10], 64, 64, 4
    $region17: #{tpu_custom_call.1} parent=1 // pred_fallthru
      _
    // Predicated region
    $region18: #{tpu_custom_call.1} parent=1 // pred_check
      _
    $region19: #{tpu_custom_call.1} parent=1 // pred_check_branch
      %69 = sbr.rel (0) target = $region21
    $region20: #{tpu_custom_call.1} parent=1 // pred_region
      _
    $region21: #{tpu_custom_call.1} parent=1 // pred_fallthru
      _
    // Predicated region
    $region22: #{tpu_custom_call.1} parent=1 // pred_check
      _
    $region23: #{tpu_custom_call.1} parent=1 // pred_check_branch
      %71 = sbr.rel (0) target = $region25
    $region24: #{tpu_custom_call.1} parent=1 // pred_region
      %73 = vsyncadd [#allocation10], 0
      %s74 = sshll.u32 %s5, 4
      %s75 = int_to_ptr.hbm [resolvable:$true] %s74
      %s76 = sshll.u32 [#allocation11], 4
      %s77 = int_to_ptr.vmem [resolvable:$true] %s76
      %82 = dma.hbm_to_vmem [thread:$0]  %s75, 256, %s77, [#allocation10], 64, 64, 4
    $region25: #{tpu_custom_call.1} parent=1 // pred_fallthru
      _
    // Predicated region
    $region26: #{tpu_custom_call.1} parent=1 // pred_check
      _
    $region27: #{tpu_custom_call.1} parent=1 // pred_check_branch
      %84 = sbr.rel (0) target = $region29
    $region28: #{tpu_custom_call.1} parent=1 // pred_region
      _
    $region29: #{tpu_custom_call.1} parent=1 // pred_fallthru
      _
    // Predicated region
    $region30: #{tpu_custom_call.1} parent=1 // pred_check
      _
    $region31: #{tpu_custom_call.1} parent=1 // pred_check_branch
      %86 = sbr.rel (0) target = $region33
    $region32: #{tpu_custom_call.1} parent=1 // pred_region
      %88 = dma.done [#allocation4], 256
    $region33: #{tpu_custom_call.1} parent=1 // pred_fallthru
      _
    // Predicated region
    $region34: #{tpu_custom_call.1} parent=1 // pred_check
      _
    $region35: #{tpu_custom_call.1} parent=1 // pred_check_branch
      %90 = sbr.rel (0) target = $region37
    $region36: #{tpu_custom_call.1} parent=1 // pred_region
      %92 = dma.done [#allocation7], 256
    $region37: #{tpu_custom_call.1} parent=1 // pred_fallthru
      _
    // Predicated region
    $region38: #{tpu_custom_call.1} parent=1 // pred_check
      _
    $region39: #{tpu_custom_call.1} parent=1 // pred_check_branch
      %94 = sbr.rel (0) target = $region41
    $region40: #{tpu_custom_call.1} parent=1 // pred_region
      %96 = dma.done [#allocation7], 128
    $region41: #{tpu_custom_call.1} parent=1 // pred_fallthru
      _
    // Predicated region
    $region42: #{tpu_custom_call.1} parent=1 // pred_check
      _
    $region43: #{tpu_custom_call.1} parent=1 // pred_check_branch
      %98 = sbr.rel (0) target = $region45
    $region44: #{tpu_custom_call.1} parent=1 // pred_region
      %100 = dma.done [#allocation10], 128
    $region45: #{tpu_custom_call.1} parent=1 // pred_fallthru
      _
    // Predicated region
    $region46: #{tpu_custom_call.1} parent=1 // pred_check
      _
    $region47: #{tpu_custom_call.1} parent=1 // pred_check_branch
      %102 = sbr.rel (0) target = $region49
    $region48: #{tpu_custom_call.1} parent=1 // pred_region
      %104 = dma.done [#allocation10], 256
    $region49: #{tpu_custom_call.1} parent=1 // pred_fallthru
      _
    %p106 = scmp.eq.s32.totalorder 0, 0
    // Predicated region
    $region50: #{tpu_custom_call.1} parent=1 // pred_check
      %p107 = pneg %p106
    $region51: #{tpu_custom_call.1} parent=1 // pred_check_branch
      %109 = sbr.rel (%p107) target = $region53
    $region52: #{tpu_custom_call.1} parent=1 // pred_region
      %110 = vst [vmem:[#allocation2] sm:$0xff] 0.0
      %111 = vst [vmem:[#allocation2 + $0x8] sm:$0xff] 0.0
    $region53: #{tpu_custom_call.1} parent=1 // pred_fallthru
      _
    %v112 = vld [vmem:[#allocation3] sm:$0xff]
    %v113 = vld [vmem:[#allocation3 + $0x8] sm:$0xff]
    %v114 = vpack.c.bf16 %v113, %v112
    %v115 = vld [vmem:[#allocation8] sm:$0xf]
    %v116 = vld [vmem:[#allocation8 + $0x4] sm:$0xf]
    %v117 = vld [vmem:[#allocation6] sm:$0xff]
    %v118 = vld [vmem:[#allocation6 + $0x8] sm:$0xff]
    %v119 = vpack.c.bf16 %v118, %v117
    %v120 = vld [vmem:[#allocation9] sm:$0xf]
    %v121 = vld [vmem:[#allocation9 + $0x4] sm:$0xf]
    %v124 = vunpack.c.l.b16 %v120
    %v125 = vunpack.c.l.b16 %v121
    %v126 = vpack.c.b16 %v125, %v124
    %vm128 = vcmask 130048
    %v130 = vsel %vm128, %v119, 0
    %132 = vmatpush.bf16.msra.mxu0 0
    %133 = vmatpush.bf16.msra.mxu0 0
    %134 = vmatpush.bf16.msra.mxu0 0
    %135 = vmatpush.bf16.msra.mxu0 0
    %136 = vmatpush.bf16.msra.mxu0 0
    %137 = vmatpush.bf16.msra.mxu0 0
    %138 = vmatpush.bf16.msra.mxu0 0
    %139 = vmatpush.bf16.msra.mxu0 %v126
    %140 = vmatmul.bf16.gmra.mxu0 %v130
    %v141 = vpop.f32.mrf.mxu0
    %v142 = vadd.f32 0.0, %v141
    %v143 = vpop.f32.mrf.mxu0
    %v144 = vadd.f32 0.0, %v143
    %145 = vdwg.mxu0
    %v148 = vunpack.c.l.b16 %v115
    %v149 = vunpack.c.l.b16 %v116
    %v150 = vpack.c.b16 %v149, %v148
    %v153 = vsel %vm128, %v114, 0
    %155 = vmatpush.bf16.msra.mxu0 0
    %156 = vmatpush.bf16.msra.mxu0 0
    %157 = vmatpush.bf16.msra.mxu0 0
    %158 = vmatpush.bf16.msra.mxu0 0
    %159 = vmatpush.bf16.msra.mxu0 0
    %160 = vmatpush.bf16.msra.mxu0 0
    %161 = vmatpush.bf16.msra.mxu0 0
    %162 = vmatpush.bf16.msra.mxu0 %v150
    %163 = vmatmul.bf16.gmra.mxu0 %v153
    %v164 = vpop.f32.mrf.mxu0
    %v165 = vadd.f32 %v142, %v164
    %v166 = vpop.f32.mrf.mxu0
    %v167 = vadd.f32 %v144, %v166
    %168 = vdwg.mxu0
    %v169 = vld [vmem:[%s4] sm:$0x1]
    %v171 = vperm.slane %v169, 0
    %v173 = vadd.f32 %v165, %v171
    %v174 = vadd.f32 %v167, %v171
    %v175 = vmul.f32 %v173, 0.2
    %v176 = vmul.f32 %v174, 0.2
    %v177 = vmax.f32 %v173, %v175
    %v178 = vmax.f32 %v174, %v176
    %v179 = vld [vmem:[#allocation2] sm:$0xff]
    %v180 = vld [vmem:[#allocation2 + $0x8] sm:$0xff]
    %v181 = vpack.c.bf16 %v178, %v177
    %v182 = vld [vmem:[#allocation11] sm:$0xf]
    %v183 = vld [vmem:[#allocation11 + $0x4] sm:$0xf]
    %v184 = vld [vmem:[#allocation11 + $0x8] sm:$0xf]
    %v185 = vld [vmem:[#allocation11 + $0xc] sm:$0xf]
    %v190 = vunpack.c.l.b16 %v182
    %v191 = vunpack.c.l.b16 %v183
    %v192 = vunpack.c.l.b16 %v184
    %v193 = vunpack.c.l.b16 %v185
    %v194 = vpack.c.b16 %v191, %v190
    %v195 = vpack.c.b16 %v193, %v192
    %vm198 = vcmask 261120
    %v200 = vsel %vm198, %v181, 0
    %202 = vmatpush.bf16.msra.mxu0 0
    %203 = vmatpush.bf16.msra.mxu0 0
    %204 = vmatpush.bf16.msra.mxu0 0
    %205 = vmatpush.bf16.msra.mxu0 0
    %206 = vmatpush.bf16.msra.mxu0 0
    %207 = vmatpush.bf16.msra.mxu0 0
    %208 = vmatpush.bf16.msra.mxu0 %v195
    %209 = vmatpush.bf16.msra.mxu0 %v194
    %210 = vmatmul.bf16.gmra.mxu0 %v200
    %v211 = vpop.f32.mrf.mxu0
    %v212 = vadd.f32 0.0, %v211
    %v213 = vpop.f32.mrf.mxu0
    %v214 = vadd.f32 0.0, %v213
    %215 = vdwg.mxu0
    %v216 = vadd.f32 %v179, %v212
    %v217 = vadd.f32 %v180, %v214
    %218 = vst [vmem:[#allocation2] sm:$0xff] %v216
    %219 = vst [vmem:[#allocation2 + $0x8] sm:$0xff] %v217
    // Predicated region
    $region54: #{tpu_custom_call.1} parent=1 // pred_check
      %p220 = pneg %p106
    $region55: #{tpu_custom_call.1} parent=1 // pred_check_branch
      %222 = sbr.rel (%p220) target = $region57
    $region56: #{tpu_custom_call.1} parent=1 // pred_region
      %v223 = vld [vmem:[#allocation2] sm:$0xff]
      %v224 = vld [vmem:[#allocation2 + $0x8] sm:$0xff]
      %v225 = vld [vmem:[%s6] sm:$0x1]
      %v227 = vperm.slane %v225, 0
      %v229 = vadd.f32 %v223, %v227
      %v230 = vadd.f32 %v224, %v227
      %231 = vst [vmem:[#allocation12] sm:$0xff] %v229
      %232 = vst [vmem:[#allocation12 + $0x8] sm:$0xff] %v230
    $region57: #{tpu_custom_call.1} parent=1 // pred_fallthru
      _
    // Predicated region
    $region58: #{tpu_custom_call.1} parent=1 // pred_check
      _
    $region59: #{tpu_custom_call.1} parent=1 // pred_check_branch
      %234 = sbr.rel (0) target = $region61
    $region60: #{tpu_custom_call.1} parent=1 // pred_region
      %236 = vsyncadd [#allocation5], 0
      %s237 = sshll.u32 [#allocation12], 4
      %s238 = int_to_ptr.vmem [resolvable:$true] %s237
      %s239 = sshll.u32 %s7, 4
      %s240 = int_to_ptr.hbm [resolvable:$true] %s239
      %245 = dma.vmem_to_hbm [thread:$0]  %s238, 256, %s240, [#allocation5], 128, 128, 8
    $region61: #{tpu_custom_call.1} parent=1 // pred_fallthru
      _
    // Predicated region
    $region62: #{tpu_custom_call.1} parent=1 // pred_check
      _
    $region63: #{tpu_custom_call.1} parent=1 // pred_check_branch
      %247 = sbr.rel (0) target = $region65
    $region64: #{tpu_custom_call.1} parent=1 // pred_region
      %249 = dma.done [#allocation5], 256
    $region65: #{tpu_custom_call.1} parent=1 // pred_fallthru
      _
    %250 = vsyncpa [#allocation4], 1
    %251 = vsyncpa [#allocation7], 1
    %252 = vsyncpa [#allocation10], 1
    %253 = vsyncpa [#allocation5], 1

</llo_original>
